<compile_context>
chip_gen: v5e
topology: v5e:2x2
jax: 0.10.0
libtpu: 0.0.40
codegen_flags: <defaults>
</compile_context>

<pallas_src>
import jax
import jax.numpy as jnp
import numpy as np
from jax.experimental import pallas as pl
from jax.experimental.pallas import tpu as pltpu


def _make_kernel(H, W, C_in, C_mid, C_out):
    HW = H * W
    TAPS = [(dy, dx) for dy in (-1, 0, 1) for dx in (-1, 0, 1)]

    def kernel(x_ref, w1_ref, b1_ref, w2_ref, b2_ref, m_ref, o_ref):
        # x_ref : (1, C_in, HW)     one batch element, channels on sublanes
        # w1_ref: (9*C_mid, C_in)   3x3 weights, the 9 taps stacked along rows
        # b1_ref: (C_mid, 1)
        # w2_ref: (C_out, C_mid)    1x1 weights
        # b2_ref: (C_out, 1)
        # m_ref : (9, HW)           0/1 boundary mask per tap (zero padding)
        # o_ref : (1, C_out, HW)
        x = x_ref[0]                                            # (C_in, HW)

        # One MXU contraction for all nine taps:
        # rows [k*C_mid:(k+1)*C_mid] of z = W1_k @ x (still unshifted).
        z = jnp.dot(w1_ref[...], x, preferred_element_type=jnp.float32)

        masks = m_ref[...]                                      # (9, HW)

        acc = jnp.zeros((C_mid, HW), jnp.float32)
        for k, (dy, dx) in enumerate(TAPS):
            zk = z[k * C_mid:(k + 1) * C_mid, :]                # (C_mid, HW)
            s = dy * W + dx                                     # flat src offset
            if s == 0:
                acc = acc + zk                                  # center tap
            else:
                # out[p] needs z_k[p + s]; np.roll semantics -> shift = -s.
                shifted = pltpu.roll(zk, shift=(-s) % HW, axis=1)
                acc = acc + shifted * masks[k:k + 1, :]

        hid = jnp.maximum(acc + b1_ref[...], 0.0)               # ReLU (C_mid,HW)

        out = jnp.dot(w2_ref[...], hid,
                      preferred_element_type=jnp.float32) + b2_ref[...]
        o_ref[0] = out                                          # (C_out, HW)

    return kernel


def conv_relu_conv(x_nchw, w1_oihw, b1, w2_oihw, b2):
    """Forward pass of ConvReluConv.

    x_nchw : (N, C_in, H, W) float32
    w1_oihw: (C_mid, C_in, 3, 3), b1: (C_mid,)
    w2_oihw: (C_out, C_mid, 1, 1), b2: (C_out,)
    returns (N, C_out, H, W) float32
    """
    N, C_in, H, W = x_nchw.shape
    C_mid = w1_oihw.shape[0]
    C_out = w2_oihw.shape[0]
    HW = H * W

    # Contiguous NCHW -> (N, C, H*W): no transpose, no pad, essentially free.
    x3 = x_nchw.reshape(N, C_in, HW).astype(jnp.float32)

    # (C_mid, C_in, 3, 3) -> (ky, kx, O, I) -> (9*C_mid, C_in); tap k = ky*3+kx.
    w1_all = jnp.transpose(w1_oihw, (2, 3, 0, 1)).reshape(9 * C_mid, C_in)
    w1_all = w1_all.astype(jnp.float32)
    w2_mat = w2_oihw[:, :, 0, 0].astype(jnp.float32)            # (C_out, C_mid)
    b1_col = b1.reshape(C_mid, 1).astype(jnp.float32)
    b2_col = b2.reshape(C_out, 1).astype(jnp.float32)

    # Host-precomputed boundary masks: mask[k, y*W + x] == 1 iff the tap source
    # (y+dy, x+dx) lies inside the image (i.e. not in the zero padding).
    taps = [(dy, dx) for dy in (-1, 0, 1) for dx in (-1, 0, 1)]
    yy, xx = np.meshgrid(np.arange(H), np.arange(W), indexing="ij")
    masks_np = np.zeros((9, HW), np.float32)
    for k, (dy, dx) in enumerate(taps):
        valid = ((yy + dy >= 0) & (yy + dy < H) &
                 (xx + dx >= 0) & (xx + dx < W))
        masks_np[k] = valid.reshape(-1)
    masks = jnp.asarray(masks_np)

    kernel = _make_kernel(H, W, C_in, C_mid, C_out)

    out3 = pl.pallas_call(
        kernel,
        out_shape=jax.ShapeDtypeStruct((N, C_out, HW), jnp.float32),
        grid_spec=pltpu.PrefetchScalarGridSpec(
            num_scalar_prefetch=0,
            grid=(N,),
            in_specs=[
                pl.BlockSpec((1, C_in, HW), lambda n: (n, 0, 0)),
                pl.BlockSpec((9 * C_mid, C_in), lambda n: (0, 0)),
                pl.BlockSpec((C_mid, 1), lambda n: (0, 0)),
                pl.BlockSpec((C_out, C_mid), lambda n: (0, 0)),
                pl.BlockSpec((C_out, 1), lambda n: (0, 0)),
                pl.BlockSpec((9, HW), lambda n: (0, 0)),
            ],
            out_specs=pl.BlockSpec((1, C_out, HW), lambda n: (n, 0, 0)),
        ),
        compiler_params=pltpu.CompilerParams(
            dimension_semantics=("parallel",)),
    )(x3, w1_all, b1_col, w2_mat, b2_col, masks)

    # (N, C_out, HW) is already NCHW order -> free reshape back.
    return out3.reshape(N, C_out, H, W)


def reference(x_nchw, w1_oihw, b1, w2_oihw, b2):
    """Pure-JAX reference matching PyTorch conv2d semantics."""
    y = jax.lax.conv_general_dilated(
        x_nchw, w1_oihw, window_strides=(1, 1), padding=((1, 1), (1, 1)),
        dimension_numbers=("NCHW", "OIHW", "NCHW"))
    y = y + b1[None, :, None, None]
    y = jnp.maximum(y, 0.0)
    z = jax.lax.conv_general_dilated(
        y, w2_oihw, window_strides=(1, 1), padding=((0, 0), (0, 0)),
        dimension_numbers=("NCHW", "OIHW", "NCHW"))
    return z + b2[None, :, None, None]


if __name__ == "__main__":
    # Small, deterministic shapes consistent with the module.
    N, C_in, C_mid, C_out, H, W = 2, 4, 8, 3, 16, 16

    key = jax.random.PRNGKey(0)
    k_x, k_w1, k_b1, k_w2, k_b2 = jax.random.split(key, 5)

    x = jax.random.normal(k_x, (N, C_in, H, W), dtype=jnp.float32)
    w1 = jax.random.normal(k_w1, (C_mid, C_in, 3, 3), dtype=jnp.float32) * 0.1
    b1 = jax.random.normal(k_b1, (C_mid,), dtype=jnp.float32) * 0.1
    w2 = jax.random.normal(k_w2, (C_out, C_mid, 1, 1), dtype=jnp.float32) * 0.1
    b2 = jax.random.normal(k_b2, (C_out,), dtype=jnp.float32) * 0.1

    out = conv_relu_conv(x, w1, b1, w2, b2)
    out = jax.block_until_ready(out)

    ref = jax.block_until_ready(reference(x, w1, b1, w2, b2))
    np.testing.assert_allclose(np.asarray(out), np.asarray(ref),
                               rtol=1e-4, atol=1e-4)

    print("KERNEL_OK")
</pallas_src>

<mosaic_0001>
module attributes {stable_mosaic.version = 11 : i64} {
  func.func @kernel(%arg0: i32, %arg1: memref<1x4x256xf32, #tpu.memory_space<vmem>>, %arg2: memref<72x4xf32, #tpu.memory_space<vmem>>, %arg3: memref<8x1xf32, #tpu.memory_space<vmem>>, %arg4: memref<3x8xf32, #tpu.memory_space<vmem>>, %arg5: memref<3x1xf32, #tpu.memory_space<vmem>>, %arg6: memref<9x256xf32, #tpu.memory_space<vmem>>, %arg7: memref<1x3x256xf32, #tpu.memory_space<vmem>>) attributes {dimension_semantics = [#tpu.dimension_semantics<parallel>], iteration_bounds = array<i64: 2>, scalar_prefetch = 0 : i64, scratch_operands = 0 : i64, tpu.core_type = #tpu.core_type<tc>, window_params = [{transform_indices = @transform_0, window_bounds = array<i64: 1, 4, 256>}, {pipeline_mode = #tpu.pipeline_mode<synchronous>, transform_indices = @transform_1, window_bounds = array<i64: 72, 4>}, {pipeline_mode = #tpu.pipeline_mode<synchronous>, transform_indices = @transform_2, window_bounds = array<i64: 8, 1>}, {pipeline_mode = #tpu.pipeline_mode<synchronous>, transform_indices = @transform_3, window_bounds = array<i64: 3, 8>}, {pipeline_mode = #tpu.pipeline_mode<synchronous>, transform_indices = @transform_4, window_bounds = array<i64: 3, 1>}, {pipeline_mode = #tpu.pipeline_mode<synchronous>, transform_indices = @transform_5, window_bounds = array<i64: 9, 256>}, {transform_indices = @transform_6, window_bounds = array<i64: 1, 3, 256>}]} {
    %c0 = arith.constant 0 : index
    %c0_0 = arith.constant 0 : index
    %c0_1 = arith.constant 0 : index
    %0 = vector.load %arg1[%c0, %c0_0, %c0_1] : memref<1x4x256xf32, #tpu.memory_space<vmem>>, vector<1x4x256xf32>
    %1 = vector.shape_cast %0 : vector<1x4x256xf32> to vector<4x256xf32>
    %c0_2 = arith.constant 0 : index
    %c0_3 = arith.constant 0 : index
    %2 = vector.load %arg2[%c0_2, %c0_3] : memref<72x4xf32, #tpu.memory_space<vmem>>, vector<72x4xf32>
    %cst = arith.constant dense<0.000000e+00> : vector<72x256xf32>
    %3 = tpu.matmul %2, %1, %cst {dimension_numbers = #tpu.dot_dimension_numbers<[1], [0], [0], [1], [0, 0, 1, 1], [], []>} : vector<72x4xf32>, vector<4x256xf32>, vector<72x256xf32> -> vector<72x256xf32>
    %c0_4 = arith.constant 0 : index
    %c0_5 = arith.constant 0 : index
    %4 = vector.load %arg6[%c0_4, %c0_5] : memref<9x256xf32, #tpu.memory_space<vmem>>, vector<9x256xf32>
    %cst_6 = arith.constant 0.000000e+00 : f32
    %5 = vector.broadcast %cst_6 : f32 to vector<8x256xf32>
    %6 = vector.extract_strided_slice %3 {offsets = [0, 0], sizes = [8, 256], strides = [1, 1]} : vector<72x256xf32> to vector<8x256xf32>
    %c17_i32 = arith.constant 17 : i32
    %7 = tpu.dynamic_rotate %6 by %c17_i32 dim 1 : vector<8x256xf32>, i32 -> vector<8x256xf32>
    %8 = vector.extract_strided_slice %4 {offsets = [0, 0], sizes = [1, 256], strides = [1, 1]} : vector<9x256xf32> to vector<1x256xf32>
    %9 = vector.broadcast %8 : vector<1x256xf32> to vector<8x256xf32>
    %10 = arith.mulf %7, %9 : vector<8x256xf32>
    %11 = arith.addf %5, %10 : vector<8x256xf32>
    %12 = vector.extract_strided_slice %3 {offsets = [8, 0], sizes = [8, 256], strides = [1, 1]} : vector<72x256xf32> to vector<8x256xf32>
    %c16_i32 = arith.constant 16 : i32
    %13 = tpu.dynamic_rotate %12 by %c16_i32 dim 1 : vector<8x256xf32>, i32 -> vector<8x256xf32>
    %14 = vector.extract_strided_slice %4 {offsets = [1, 0], sizes = [1, 256], strides = [1, 1]} : vector<9x256xf32> to vector<1x256xf32>
    %15 = vector.broadcast %14 : vector<1x256xf32> to vector<8x256xf32>
    %16 = arith.mulf %13, %15 : vector<8x256xf32>
    %17 = arith.addf %11, %16 : vector<8x256xf32>
    %18 = vector.extract_strided_slice %3 {offsets = [16, 0], sizes = [8, 256], strides = [1, 1]} : vector<72x256xf32> to vector<8x256xf32>
    %c15_i32 = arith.constant 15 : i32
    %19 = tpu.dynamic_rotate %18 by %c15_i32 dim 1 : vector<8x256xf32>, i32 -> vector<8x256xf32>
    %20 = vector.extract_strided_slice %4 {offsets = [2, 0], sizes = [1, 256], strides = [1, 1]} : vector<9x256xf32> to vector<1x256xf32>
    %21 = vector.broadcast %20 : vector<1x256xf32> to vector<8x256xf32>
    %22 = arith.mulf %19, %21 : vector<8x256xf32>
    %23 = arith.addf %17, %22 : vector<8x256xf32>
    %24 = vector.extract_strided_slice %3 {offsets = [24, 0], sizes = [8, 256], strides = [1, 1]} : vector<72x256xf32> to vector<8x256xf32>
    %c1_i32 = arith.constant 1 : i32
    %25 = tpu.dynamic_rotate %24 by %c1_i32 dim 1 : vector<8x256xf32>, i32 -> vector<8x256xf32>
    %26 = vector.extract_strided_slice %4 {offsets = [3, 0], sizes = [1, 256], strides = [1, 1]} : vector<9x256xf32> to vector<1x256xf32>
    %27 = vector.broadcast %26 : vector<1x256xf32> to vector<8x256xf32>
    %28 = arith.mulf %25, %27 : vector<8x256xf32>
    %29 = arith.addf %23, %28 : vector<8x256xf32>
    %30 = vector.extract_strided_slice %3 {offsets = [32, 0], sizes = [8, 256], strides = [1, 1]} : vector<72x256xf32> to vector<8x256xf32>
    %31 = arith.addf %29, %30 : vector<8x256xf32>
    %32 = vector.extract_strided_slice %3 {offsets = [40, 0], sizes = [8, 256], strides = [1, 1]} : vector<72x256xf32> to vector<8x256xf32>
    %c255_i32 = arith.constant 255 : i32
    %33 = tpu.dynamic_rotate %32 by %c255_i32 dim 1 : vector<8x256xf32>, i32 -> vector<8x256xf32>
    %34 = vector.extract_strided_slice %4 {offsets = [5, 0], sizes = [1, 256], strides = [1, 1]} : vector<9x256xf32> to vector<1x256xf32>
    %35 = vector.broadcast %34 : vector<1x256xf32> to vector<8x256xf32>
    %36 = arith.mulf %33, %35 : vector<8x256xf32>
    %37 = arith.addf %31, %36 : vector<8x256xf32>
    %38 = vector.extract_strided_slice %3 {offsets = [48, 0], sizes = [8, 256], strides = [1, 1]} : vector<72x256xf32> to vector<8x256xf32>
    %c241_i32 = arith.constant 241 : i32
    %39 = tpu.dynamic_rotate %38 by %c241_i32 dim 1 : vector<8x256xf32>, i32 -> vector<8x256xf32>
    %40 = vector.extract_strided_slice %4 {offsets = [6, 0], sizes = [1, 256], strides = [1, 1]} : vector<9x256xf32> to vector<1x256xf32>
    %41 = vector.broadcast %40 : vector<1x256xf32> to vector<8x256xf32>
    %42 = arith.mulf %39, %41 : vector<8x256xf32>
    %43 = arith.addf %37, %42 : vector<8x256xf32>
    %44 = vector.extract_strided_slice %3 {offsets = [56, 0], sizes = [8, 256], strides = [1, 1]} : vector<72x256xf32> to vector<8x256xf32>
    %c240_i32 = arith.constant 240 : i32
    %45 = tpu.dynamic_rotate %44 by %c240_i32 dim 1 : vector<8x256xf32>, i32 -> vector<8x256xf32>
    %46 = vector.extract_strided_slice %4 {offsets = [7, 0], sizes = [1, 256], strides = [1, 1]} : vector<9x256xf32> to vector<1x256xf32>
    %47 = vector.broadcast %46 : vector<1x256xf32> to vector<8x256xf32>
    %48 = arith.mulf %45, %47 : vector<8x256xf32>
    %49 = arith.addf %43, %48 : vector<8x256xf32>
    %50 = vector.extract_strided_slice %3 {offsets = [64, 0], sizes = [8, 256], strides = [1, 1]} : vector<72x256xf32> to vector<8x256xf32>
    %c239_i32 = arith.constant 239 : i32
    %51 = tpu.dynamic_rotate %50 by %c239_i32 dim 1 : vector<8x256xf32>, i32 -> vector<8x256xf32>
    %52 = vector.extract_strided_slice %4 {offsets = [8, 0], sizes = [1, 256], strides = [1, 1]} : vector<9x256xf32> to vector<1x256xf32>
    %53 = vector.broadcast %52 : vector<1x256xf32> to vector<8x256xf32>
    %54 = arith.mulf %51, %53 : vector<8x256xf32>
    %55 = arith.addf %49, %54 : vector<8x256xf32>
    %c0_7 = arith.constant 0 : index
    %c0_8 = arith.constant 0 : index
    %56 = vector.load %arg3[%c0_7, %c0_8] : memref<8x1xf32, #tpu.memory_space<vmem>>, vector<8x1xf32>
    %57 = vector.broadcast %56 : vector<8x1xf32> to vector<8x256xf32>
    %58 = arith.addf %55, %57 : vector<8x256xf32>
    %cst_9 = arith.constant 0.000000e+00 : f32
    %59 = vector.broadcast %cst_9 : f32 to vector<8x256xf32>
    %60 = arith.maximumf %58, %59 : vector<8x256xf32>
    %c0_10 = arith.constant 0 : index
    %c0_11 = arith.constant 0 : index
    %61 = vector.load %arg4[%c0_10, %c0_11] : memref<3x8xf32, #tpu.memory_space<vmem>>, vector<3x8xf32>
    %cst_12 = arith.constant dense<0.000000e+00> : vector<3x256xf32>
    %62 = tpu.matmul %61, %60, %cst_12 {dimension_numbers = #tpu.dot_dimension_numbers<[1], [0], [0], [1], [0, 0, 1, 1], [], []>} : vector<3x8xf32>, vector<8x256xf32>, vector<3x256xf32> -> vector<3x256xf32>
    %c0_13 = arith.constant 0 : index
    %c0_14 = arith.constant 0 : index
    %63 = vector.load %arg5[%c0_13, %c0_14] : memref<3x1xf32, #tpu.memory_space<vmem>>, vector<3x1xf32>
    %64 = vector.broadcast %63 : vector<3x1xf32> to vector<3x256xf32>
    %65 = arith.addf %62, %64 : vector<3x256xf32>
    %c0_15 = arith.constant 0 : index
    %c0_16 = arith.constant 0 : index
    %c0_17 = arith.constant 0 : index
    %66 = vector.load %arg7[%c0_15, %c0_16, %c0_17] : memref<1x3x256xf32, #tpu.memory_space<vmem>>, vector<1x3x256xf32>
    %67 = vector.shape_cast %66 : vector<1x3x256xf32> to vector<3x256xf32>
    %68 = vector.shape_cast %65 : vector<3x256xf32> to vector<1x3x256xf32>
    tpu.vector_store %arg7[%c0_15, %c0_16, %c0_17], %68 {strides = array<i32>} : memref<1x3x256xf32, #tpu.memory_space<vmem>>, vector<1x3x256xf32>,
    return
  }
  func.func @transform_0(%arg0: i32) -> (i32, i32, i32) {
    %c0_i32 = arith.constant 0 : i32
    %c0_i32_0 = arith.constant 0 : i32
    %c0_i32_1 = arith.constant 0 : i32
    return %arg0, %c0_i32, %c0_i32_0 : i32, i32, i32
  }
  func.func @transform_1(%arg0: i32) -> (i32, i32) {
    %c0_i32 = arith.constant 0 : i32
    %c0_i32_0 = arith.constant 0 : i32
    %c0_i32_1 = arith.constant 0 : i32
    return %c0_i32, %c0_i32_0 : i32, i32
  }
  func.func @transform_2(%arg0: i32) -> (i32, i32) {
    %c0_i32 = arith.constant 0 : i32
    %c0_i32_0 = arith.constant 0 : i32
    %c0_i32_1 = arith.constant 0 : i32
    return %c0_i32, %c0_i32_0 : i32, i32
  }
  func.func @transform_3(%arg0: i32) -> (i32, i32) {
    %c0_i32 = arith.constant 0 : i32
    %c0_i32_0 = arith.constant 0 : i32
    %c0_i32_1 = arith.constant 0 : i32
    return %c0_i32, %c0_i32_0 : i32, i32
  }
  func.func @transform_4(%arg0: i32) -> (i32, i32) {
    %c0_i32 = arith.constant 0 : i32
    %c0_i32_0 = arith.constant 0 : i32
    %c0_i32_1 = arith.constant 0 : i32
    return %c0_i32, %c0_i32_0 : i32, i32
  }
  func.func @transform_5(%arg0: i32) -> (i32, i32) {
    %c0_i32 = arith.constant 0 : i32
    %c0_i32_0 = arith.constant 0 : i32
    %c0_i32_1 = arith.constant 0 : i32
    return %c0_i32, %c0_i32_0 : i32, i32
  }
  func.func @transform_6(%arg0: i32) -> (i32, i32, i32) {
    %c0_i32 = arith.constant 0 : i32
    %c0_i32_0 = arith.constant 0 : i32
    %c0_i32_1 = arith.constant 0 : i32
    return %arg0, %c0_i32, %c0_i32_0 : i32, i32, i32
  }
}

</mosaic_0001>

<llo_original>
// kernel: tpu_custom_call.1
$region0: #{tpu_custom_call.1}
  #allocation0 [shape = 'u32[]', space=smem, size = 0x4, offset = 0x4, fixed_abs, tag = 'smem constant byte address 0x4 - core index']
  #allocation1 [shape = 'u32[72,128]{1,0:T(1,128)}', space=vmem, size = 0x9000, scoped, tag = 'internal scratch']
  %s0 = inlined_call_operand.vmem [shape: f32[2,4,256], index: 0, kind: input, shape index: {}]
  %s1 = inlined_call_operand.vmem [shape: f32[72,4], index: 1, kind: input, shape index: {}]
  %s2 = inlined_call_operand.vmem [shape: f32[8,1], index: 2, kind: input, shape index: {}]
  %s3 = inlined_call_operand.vmem [shape: f32[3,8], index: 3, kind: input, shape index: {}]
  %s4 = inlined_call_operand.vmem [shape: f32[3,1], index: 4, kind: input, shape index: {}]
  %s5 = inlined_call_operand.vmem [shape: f32[9,256], index: 5, kind: input, shape index: {}]
  %s6 = inlined_call_operand.vmem [shape: f32[2,3,256], index: 6, kind: output, shape index: {}]
  %s7 = sld [smem:[#allocation0]]
  $region57: #{tpu_custom_call.1} parent=0
    _
  %s9 = ssub.s32 1, %s7
  %s10 = scalar_select 0, %s9, %s7
  loop: start=0, step=1, limit=4
  $region2: #{tpu_custom_call.1} parent=0 // loop_pre_header
    _
  $region3: #{tpu_custom_call.1} parent=0 // loop_header
    %s12 = sphi 0, %s16
    %p13 = scmp.ge.s32.totalorder %s12, 4
    %s22 = sphi 0, %s24
    %s25 = sphi 0, %s22
    %s26 = sphi 0, %s25
    %s42 = sphi 0, %s26
    %s46 = sphi 0, %s46
    %s48 = sphi 0, %s46
    %s49 = sphi 0, %s48
    %s63 = sphi 0, %s49
    %s67 = sphi 0, %s67
    %s69 = sphi 0, %s67
    %s70 = sphi 0, %s69
    %s84 = sphi 0, %s70
    %s88 = sphi 0, %s88
    %s90 = sphi 0, %s88
    %s91 = sphi 0, %s90
    %s105 = sphi 0, %s91
    %s109 = sphi 0, %s109
    %s111 = sphi 0, %s109
    %s112 = sphi 0, %s111
    %s126 = sphi 0, %s112
    %s130 = sphi 0, %s130
    %s132 = sphi 0, %s130
    %s133 = sphi 0, %s132
    %s147 = sphi 0, %s133
    %s153 = sphi 0, %s155
    %s156 = sphi 0, %s153
    %s157 = sphi 0, %s156
    %s173 = sphi 0, %s157
  $region4: #{tpu_custom_call.1} parent=0 // loop_header_branch
    %15 = sbr.rel (%p13) target = $region8
  $region5: #{tpu_custom_call.1} parent=0 // loop_body
    %s17 = ssub.s32 %s12, 1
    %s18 = ssub.s32 %s12, 2
    %s19 = sadd.s32 %s12, 1
    %s20 = ssub.s32 %s12, %s19
    %p21 = scmp.eq.s32.totalorder %s20, 0
    %s23 = sadd.s32 %s22, 1
    %s24 = scalar_select %p21, %s22, %s23
    %p27 = pneg %p21
    %p28 = scmp.eq.s32.totalorder %s12, 1
    %p29 = por %p27, %p28
    %p30 = scmp.ne.s32.totalorder %s22, %s25
    %p31 = scmp.eq.s32.totalorder %s12, 0
    %p32 = por %p30, %p31
    %p33 = scmp.ne.s32.totalorder %s22, %s25
    %p34 = scmp.eq.s32.totalorder %s17, 1
    %p35 = por %p33, %p34
    %p36 = scmp.ne.s32.totalorder %s25, %s26
    %p37 = scmp.eq.s32.totalorder %s17, 0
    %p38 = por %p36, %p37
    %p39 = scmp.ne.s32.totalorder %s25, %s26
    %p40 = scmp.eq.s32.totalorder %s18, 1
    %p41 = por %p39, %p40
    %p43 = scmp.ne.s32.totalorder %s26, %s42
    %p44 = scmp.eq.s32.totalorder %s18, 0
    %p45 = por %p43, %p44
    %s47 = sadd.s32 %s46, 1
    %p50 = scmp.eq.s32.totalorder %s12, 1
    %p51 = scmp.ne.s32.totalorder %s46, %s48
    %p52 = scmp.eq.s32.totalorder %s12, 0
    %p53 = por %p51, %p52
    %p54 = scmp.ne.s32.totalorder %s46, %s48
    %p55 = scmp.eq.s32.totalorder %s17, 1
    %p56 = por %p54, %p55
    %p57 = scmp.ne.s32.totalorder %s48, %s49
    %p58 = scmp.eq.s32.totalorder %s17, 0
    %p59 = por %p57, %p58
    %p60 = scmp.ne.s32.totalorder %s48, %s49
    %p61 = scmp.eq.s32.totalorder %s18, 1
    %p62 = por %p60, %p61
    %p64 = scmp.ne.s32.totalorder %s49, %s63
    %p65 = scmp.eq.s32.totalorder %s18, 0
    %p66 = por %p64, %p65
    %s68 = sadd.s32 %s67, 1
    %p71 = scmp.eq.s32.totalorder %s12, 1
    %p72 = scmp.ne.s32.totalorder %s67, %s69
    %p73 = scmp.eq.s32.totalorder %s12, 0
    %p74 = por %p72, %p73
    %p75 = scmp.ne.s32.totalorder %s67, %s69
    %p76 = scmp.eq.s32.totalorder %s17, 1
    %p77 = por %p75, %p76
    %p78 = scmp.ne.s32.totalorder %s69, %s70
    %p79 = scmp.eq.s32.totalorder %s17, 0
    %p80 = por %p78, %p79
    %p81 = scmp.ne.s32.totalorder %s69, %s70
    %p82 = scmp.eq.s32.totalorder %s18, 1
    %p83 = por %p81, %p82
    %p85 = scmp.ne.s32.totalorder %s70, %s84
    %p86 = scmp.eq.s32.totalorder %s18, 0
    %p87 = por %p85, %p86
    %s89 = sadd.s32 %s88, 1
    %p92 = scmp.eq.s32.totalorder %s12, 1
    %p93 = scmp.ne.s32.totalorder %s88, %s90
    %p94 = scmp.eq.s32.totalorder %s12, 0
    %p95 = por %p93, %p94
    %p96 = scmp.ne.s32.totalorder %s88, %s90
    %p97 = scmp.eq.s32.totalorder %s17, 1
    %p98 = por %p96, %p97
    %p99 = scmp.ne.s32.totalorder %s90, %s91
    %p100 = scmp.eq.s32.totalorder %s17, 0
    %p101 = por %p99, %p100
    %p102 = scmp.ne.s32.totalorder %s90, %s91
    %p103 = scmp.eq.s32.totalorder %s18, 1
    %p104 = por %p102, %p103
    %p106 = scmp.ne.s32.totalorder %s91, %s105
    %p107 = scmp.eq.s32.totalorder %s18, 0
    %p108 = por %p106, %p107
    %s110 = sadd.s32 %s109, 1
    %p113 = scmp.eq.s32.totalorder %s12, 1
    %p114 = scmp.ne.s32.totalorder %s109, %s111
    %p115 = scmp.eq.s32.totalorder %s12, 0
    %p116 = por %p114, %p115
    %p117 = scmp.ne.s32.totalorder %s109, %s111
    %p118 = scmp.eq.s32.totalorder %s17, 1
    %p119 = por %p117, %p118
    %p120 = scmp.ne.s32.totalorder %s111, %s112
    %p121 = scmp.eq.s32.totalorder %s17, 0
    %p122 = por %p120, %p121
    %p123 = scmp.ne.s32.totalorder %s111, %s112
    %p124 = scmp.eq.s32.totalorder %s18, 1
    %p125 = por %p123, %p124
    %p127 = scmp.ne.s32.totalorder %s112, %s126
    %p128 = scmp.eq.s32.totalorder %s18, 0
    %p129 = por %p127, %p128
    %s131 = sadd.s32 %s130, 1
    %p134 = scmp.eq.s32.totalorder %s12, 1
    %p135 = scmp.ne.s32.totalorder %s130, %s132
    %p136 = scmp.eq.s32.totalorder %s12, 0
    %p137 = por %p135, %p136
    %p138 = scmp.ne.s32.totalorder %s130, %s132
    %p139 = scmp.eq.s32.totalorder %s17, 1
    %p140 = por %p138, %p139
    %p141 = scmp.ne.s32.totalorder %s132, %s133
    %p142 = scmp.eq.s32.totalorder %s17, 0
    %p143 = por %p141, %p142
    %p144 = scmp.ne.s32.totalorder %s132, %s133
    %p145 = scmp.eq.s32.totalorder %s18, 1
    %p146 = por %p144, %p145
    %p148 = scmp.ne.s32.totalorder %s133, %s147
    %p149 = scmp.eq.s32.totalorder %s18, 0
    %p150 = por %p148, %p149
    %s151 = ssub.s32 %s12, %s19
    %p152 = scmp.eq.s32.totalorder %s151, 0
    %s154 = sadd.s32 %s153, 1
    %s155 = scalar_select %p152, %s153, %s154
    %p158 = pneg %p152
    %p159 = scmp.eq.s32.totalorder %s12, 1
    %p160 = por %p158, %p159
    %p161 = scmp.ne.s32.totalorder %s153, %s156
    %p162 = scmp.eq.s32.totalorder %s12, 0
    %p163 = por %p161, %p162
    %p164 = scmp.ne.s32.totalorder %s153, %s156
    %p165 = scmp.eq.s32.totalorder %s17, 1
    %p166 = por %p164, %p165
    %p167 = scmp.ne.s32.totalorder %s156, %s157
    %p168 = scmp.eq.s32.totalorder %s17, 0
    %p169 = por %p167, %p168
    %p170 = scmp.ne.s32.totalorder %s156, %s157
    %p171 = scmp.eq.s32.totalorder %s18, 1
    %p172 = por %p170, %p171
    %p174 = scmp.ne.s32.totalorder %s157, %s173
    %p175 = scmp.eq.s32.totalorder %s18, 0
    %p176 = por %p174, %p175
    %p177 = scmp.le.s32.totalorder 1, %s12
    %p178 = scmp.lt.s32.totalorder %s12, 3
    %p179 = pnand %p177, %p178
    %p180 = pneg %p179
    // Predicated region
    $region9: #{tpu_custom_call.1} parent=5 // pred_check
      _
    $region10: #{tpu_custom_call.1} parent=5 // pred_check_branch
      %182 = sbr.rel (%p179) target = $region12
    $region11: #{tpu_custom_call.1} parent=5 // pred_region
      %s183 = ssub.s32 %s12, 1
      // Predicated region
      $region13: #{tpu_custom_call.1} parent=11 // pred_check
        %p184 = pneg %p59
      $region14: #{tpu_custom_call.1} parent=11 // pred_check_branch
        %186 = sbr.rel (%p184) target = $region16
      $region15: #{tpu_custom_call.1} parent=11 // pred_region
        _
      $region16: #{tpu_custom_call.1} parent=11 // pred_fallthru
        _
      // Predicated region
      $region17: #{tpu_custom_call.1} parent=11 // pred_check
        %p187 = pneg %p80
      $region18: #{tpu_custom_call.1} parent=11 // pred_check_branch
        %189 = sbr.rel (%p187) target = $region20
      $region19: #{tpu_custom_call.1} parent=11 // pred_region
        _
      $region20: #{tpu_custom_call.1} parent=11 // pred_fallthru
        _
      // Predicated region
      $region21: #{tpu_custom_call.1} parent=11 // pred_check
        %p190 = pneg %p101
      $region22: #{tpu_custom_call.1} parent=11 // pred_check_branch
        %192 = sbr.rel (%p190) target = $region24
      $region23: #{tpu_custom_call.1} parent=11 // pred_region
        _
      $region24: #{tpu_custom_call.1} parent=11 // pred_fallthru
        _
      // Predicated region
      $region25: #{tpu_custom_call.1} parent=11 // pred_check
        %p193 = pneg %p122
      $region26: #{tpu_custom_call.1} parent=11 // pred_check_branch
        %195 = sbr.rel (%p193) target = $region28
      $region27: #{tpu_custom_call.1} parent=11 // pred_region
        _
      $region28: #{tpu_custom_call.1} parent=11 // pred_fallthru
        _
      // Predicated region
      $region29: #{tpu_custom_call.1} parent=11 // pred_check
        %p196 = pneg %p143
      $region30: #{tpu_custom_call.1} parent=11 // pred_check_branch
        %198 = sbr.rel (%p196) target = $region32
      $region31: #{tpu_custom_call.1} parent=11 // pred_region
        _
      $region32: #{tpu_custom_call.1} parent=11 // pred_fallthru
        _
    $region12: #{tpu_custom_call.1} parent=5 // pred_fallthru
      _
    %p199 = scmp.lt.s32.totalorder %s12, 2
    // Predicated region
    $region33: #{tpu_custom_call.1} parent=5 // pred_check
      %p200 = pneg %p199
    $region34: #{tpu_custom_call.1} parent=5 // pred_check_branch
      %202 = sbr.rel (%p200) target = $region36
    $region35: #{tpu_custom_call.1} parent=5 // pred_region
      // Predicated region
      $region37: #{tpu_custom_call.1} parent=35 // pred_check
        %p203 = pneg %p32
      $region38: #{tpu_custom_call.1} parent=35 // pred_check_branch
        %205 = sbr.rel (%p203) target = $region40
      $region39: #{tpu_custom_call.1} parent=35 // pred_region
        %p206 = scmp.lt.s32.totalorder %s12, 1
        %s207 = scalar_select %p206, %s12, 1
        %s208 = smul.addr %s207, 2
        %s209 = smul.addr %s208, 4
        %s210 = scalar_lea.vmem %s0, %s209
      $region40: #{tpu_custom_call.1} parent=35 // pred_fallthru
        _
    $region36: #{tpu_custom_call.1} parent=5 // pred_fallthru
      _
    %p211 = scmp.le.s32.totalorder 1, %s12
    %p212 = scmp.lt.s32.totalorder %s12, 3
    %p213 = pnand %p211, %p212
    %p214 = pneg %p213
    // Predicated region
    $region41: #{tpu_custom_call.1} parent=5 // pred_check
      _
    $region42: #{tpu_custom_call.1} parent=5 // pred_check_branch
      %216 = sbr.rel (%p213) target = $region44
    $region43: #{tpu_custom_call.1} parent=5 // pred_region
      %s217 = ssub.s32 %s12, 1
      %p218 = scmp.lt.s32.totalorder %s17, 1
      %s219 = scalar_select %p218, %s17, 1
      %s220 = smul.addr %s219, 2
      %s221 = smul.addr %s220, 4
      %s222 = scalar_lea.vmem %s0, %s221
      %p223 = pneg %p38
      %p224 = pneg %p35
      %p225 = pneg %p59
      %p226 = pneg %p56
      %p227 = pneg %p80
      %p228 = pneg %p77
      %p229 = pneg %p101
      %p230 = pneg %p98
      %p231 = pneg %p122
      %p232 = pneg %p119
      %p233 = pneg %p143
      %p234 = pneg %p140
      %p235 = pneg %p169
      %p236 = pneg %p166
      %p237 = scmp.lt.s32.totalorder %s17, 1
      %s238 = scalar_select %p237, %s17, 1
      %s239 = smul.addr %s238, 2
      %s240 = smul.addr %s239, 4
      %s241 = scalar_lea.vmem %s6, %s240
      %p242 = scmp.lt.s32.totalorder %s17, 1
      %s243 = scalar_select %p242, %s17, 1
      %s244 = smul.addr %s243, 2
      %s245 = smul.addr %s244, 4
      %s246 = scalar_lea.vmem %s0, %s245
      %p247 = scmp.lt.s32.totalorder %s17, 1
      %s248 = scalar_select %p247, %s17, 1
      %s249 = smul.addr %s248, 2
      %s250 = smul.addr %s249, 4
      %s251 = scalar_lea.vmem %s6, %s250
      %v252 = vld [vmem:[%s246] sm:$0xff]
      %v253 = vld [vmem:[%s1] sm:$0xff]
      %v254 = vld [vmem:[%s1 + $0x8] sm:$0xff]
      %v255 = vld [vmem:[%s1 + $0x10] sm:$0xff]
      %v256 = vld [vmem:[%s1 + $0x18] sm:$0xff]
      %v257 = vld [vmem:[%s1 + $0x20] sm:$0xff]
      %v258 = vld [vmem:[%s1 + $0x28] sm:$0xff]
      %v259 = vld [vmem:[%s1 + $0x30] sm:$0xff]
      %v260 = vld [vmem:[%s1 + $0x38] sm:$0xff]
      %v261 = vld [vmem:[%s1 + $0x40] sm:$0xff]
      %263 = vst [vmem:[#allocation1] ss:$2 sm:$0xff] %v252
      %v264 = vld.sshfl [vmem:[#allocation1] sm:$0xff pattern:$0x75316420]
      %v265 = vld.sshfl [vmem:[#allocation1 + $0x8] sm:$0xff pattern:$0x75316420]
      %vm266 = vcmask 31744
      %v268 = vsel %vm266, %v253, 0
      %v271 = vsel %vm266, %v254, 0
      %v274 = vsel %vm266, %v255, 0
      %v277 = vsel %vm266, %v256, 0
      %v280 = vsel %vm266, %v257, 0
      %v283 = vsel %vm266, %v258, 0
      %v286 = vsel %vm266, %v259, 0
      %v289 = vsel %vm266, %v260, 0
      %v292 = vsel %vm266, %v261, 0
      %vm294 = vcmask 1043456
      %v295 = vsel %vm294, %v264, 0
      %v297 = vsel %vm294, %v265, 0
      %299 = vmatpush.msra.mxu0 0.0
      %300 = vmatpush.msra.mxu0 0.0
      %301 = vmatpush.msra.mxu0 0.0
      %302 = vmatpush.msra.mxu0 0.0
      %303 = vmatpush.msra.mxu0 0.0
      %304 = vmatpush.msra.mxu0 0.0
      %305 = vmatpush.msra.mxu0 0.0
      %306 = vmatpush.msra.mxu0 0.0
      %307 = vmatpush.msra.mxu0 0.0
      %308 = vmatpush.msra.mxu0 0.0
      %309 = vmatpush.msra.mxu0 0.0
      %310 = vmatpush.msra.mxu0 0.0
      %311 = vmatpush.msra.mxu0 0.0
      %312 = vmatpush.msra.mxu0 0.0
      %313 = vmatpush.msra.mxu0 0.0
      %314 = vmatpush.msra.mxu0 %v295
      %315 = vmatmul.f32.gmra.mxu0 %v268
      %v316 = vpop.f32.mrf.mxu0
      %v317 = vadd.f32 0.0, %v316
      %318 = vmatmul.f32.gmra.mxu0 %v271
      %v319 = vpop.f32.mrf.mxu0
      %v320 = vadd.f32 0.0, %v319
      %321 = vmatmul.f32.gmra.mxu0 %v274
      %v322 = vpop.f32.mrf.mxu0
      %v323 = vadd.f32 0.0, %v322
      %324 = vmatmul.f32.gmra.mxu0 %v277
      %v325 = vpop.f32.mrf.mxu0
      %v326 = vadd.f32 0.0, %v325
      %327 = vmatmul.f32.gmra.mxu0 %v280
      %v328 = vpop.f32.mrf.mxu0
      %v329 = vadd.f32 0.0, %v328
      %330 = vmatmul.f32.gmra.mxu0 %v283
      %v331 = vpop.f32.mrf.mxu0
      %v332 = vadd.f32 0.0, %v331
      %333 = vmatmul.f32.gmra.mxu0 %v286
      %v334 = vpop.f32.mrf.mxu0
      %v335 = vadd.f32 0.0, %v334
      %336 = vmatmul.f32.gmra.mxu0 %v289
      %v337 = vpop.f32.mrf.mxu0
      %v338 = vadd.f32 0.0, %v337
      %339 = vmatmul.f32.gmra.mxu0 %v292
      %v340 = vpop.f32.mrf.mxu0
      %v341 = vadd.f32 0.0, %v340
      %342 = vdwg.mxu0
      %343 = vmatpush.msra.mxu0 0.0
      %344 = vmatpush.msra.mxu0 0.0
      %345 = vmatpush.msra.mxu0 0.0
      %346 = vmatpush.msra.mxu0 0.0
      %347 = vmatpush.msra.mxu0 0.0
      %348 = vmatpush.msra.mxu0 0.0
      %349 = vmatpush.msra.mxu0 0.0
      %350 = vmatpush.msra.mxu0 0.0
      %351 = vmatpush.msra.mxu0 0.0
      %352 = vmatpush.msra.mxu0 0.0
      %353 = vmatpush.msra.mxu0 0.0
      %354 = vmatpush.msra.mxu0 0.0
      %355 = vmatpush.msra.mxu0 0.0
      %356 = vmatpush.msra.mxu0 0.0
      %357 = vmatpush.msra.mxu0 0.0
      %358 = vmatpush.msra.mxu0 %v297
      %359 = vmatmul.f32.gmra.mxu0 %v268
      %v360 = vpop.f32.mrf.mxu0
      %v361 = vadd.f32 0.0, %v360
      %362 = vmatmul.f32.gmra.mxu0 %v271
      %v363 = vpop.f32.mrf.mxu0
      %v364 = vadd.f32 0.0, %v363
      %365 = vmatmul.f32.gmra.mxu0 %v274
      %v366 = vpop.f32.mrf.mxu0
      %v367 = vadd.f32 0.0, %v366
      %368 = vmatmul.f32.gmra.mxu0 %v277
      %v369 = vpop.f32.mrf.mxu0
      %v370 = vadd.f32 0.0, %v369
      %371 = vmatmul.f32.gmra.mxu0 %v280
      %v372 = vpop.f32.mrf.mxu0
      %v373 = vadd.f32 0.0, %v372
      %374 = vmatmul.f32.gmra.mxu0 %v283
      %v375 = vpop.f32.mrf.mxu0
      %v376 = vadd.f32 0.0, %v375
      %377 = vmatmul.f32.gmra.mxu0 %v286
      %v378 = vpop.f32.mrf.mxu0
      %v379 = vadd.f32 0.0, %v378
      %380 = vmatmul.f32.gmra.mxu0 %v289
      %v381 = vpop.f32.mrf.mxu0
      %v382 = vadd.f32 0.0, %v381
      %383 = vmatmul.f32.gmra.mxu0 %v292
      %v384 = vpop.f32.mrf.mxu0
      %v385 = vadd.f32 0.0, %v384
      %386 = vdwg.mxu0
      %v387 = vld [vmem:[%s5] sm:$0xff]
      %v388 = vld [vmem:[%s5 + $0x8] sm:$0xff]
      %v389 = vld [vmem:[%s5 + $0x10] sm:$0x1]
      %v390 = vld [vmem:[%s5 + $0x18] sm:$0x1]
      %391 = vrot.lane.b32.xlu0 %v317, 17
      %v392 = vpop.permute.xlu0 %391
      %393 = vrot.lane.b32.xlu0 %v361, 17
      %v394 = vpop.permute.xlu0 %393
      %v395 = vlaneseq
      %v396 = vand.u32 %v395, 127
      %vm397 = vcmp.lt.s32.totalorder %v396, 17
      %v398 = vsel %vm397, %v392, %v394
      %v399 = vsel %vm397, %v394, %v392
      %v400 = vperm.slane %v387, 0
      %v401 = vperm.slane %v388, 0
      %v402 = vmul.f32 %v399, %v400
      %v403 = vmul.f32 %v398, %v401
      %v404 = vadd.f32 %v402, 0.0
      %v405 = vadd.f32 %v403, 0.0
      %406 = vrot.lane.b32.xlu0 %v320, 16
      %v407 = vpop.permute.xlu0 %406
      %408 = vrot.lane.b32.xlu0 %v364, 16
      %v409 = vpop.permute.xlu0 %408
      %vm410 = vcmp.lt.s32.totalorder %v396, 16
      %v411 = vsel %vm410, %v407, %v409
      %v412 = vsel %vm410, %v409, %v407
      %v413 = vperm.slane %v387, 1
      %v414 = vperm.slane %v388, 1
      %v415 = vmul.f32 %v412, %v413
      %v416 = vmul.f32 %v411, %v414
      %v417 = vadd.f32 %v404, %v415
      %v418 = vadd.f32 %v405, %v416
      %419 = vrot.lane.b32.xlu0 %v323, 15
      %v420 = vpop.permute.xlu0 %419
      %421 = vrot.lane.b32.xlu0 %v367, 15
      %v422 = vpop.permute.xlu0 %421
      %vm423 = vcmp.lt.s32.totalorder %v396, 15
      %v424 = vsel %vm423, %v420, %v422
      %v425 = vsel %vm423, %v422, %v420
      %v426 = vperm.slane %v387, 2
      %v427 = vperm.slane %v388, 2
      %v428 = vmul.f32 %v425, %v426
      %v429 = vmul.f32 %v424, %v427
      %v430 = vadd.f32 %v417, %v428
      %v431 = vadd.f32 %v418, %v429
      %432 = vrot.lane.b32.xlu0 %v326, 1
      %v433 = vpop.permute.xlu0 %432
      %434 = vrot.lane.b32.xlu0 %v370, 1
      %v435 = vpop.permute.xlu0 %434
      %vm436 = vcmp.lt.s32.totalorder %v396, 1
      %v437 = vsel %vm436, %v433, %v435
      %v438 = vsel %vm436, %v435, %v433
      %v439 = vperm.slane %v387, 3
      %v440 = vperm.slane %v388, 3
      %v441 = vmul.f32 %v438, %v439
      %v442 = vmul.f32 %v437, %v440
      %v443 = vadd.f32 %v430, %v441
      %v444 = vadd.f32 %v431, %v442
      %v445 = vadd.f32 %v443, %v329
      %v446 = vadd.f32 %v444, %v373
      %447 = vrot.lane.b32.xlu0 %v332, 127
      %v448 = vpop.permute.xlu0 %447
      %449 = vrot.lane.b32.xlu0 %v376, 127
      %v450 = vpop.permute.xlu0 %449
      %vm451 = vcmp.lt.s32.totalorder %v396, 127
      %v452 = vsel %vm451, %v448, %v450
      %v453 = vsel %vm451, %v450, %v448
      %v454 = vperm.slane %v387, 5
      %v455 = vperm.slane %v388, 5
      %v456 = vmul.f32 %v452, %v454
      %v457 = vmul.f32 %v453, %v455
      %v458 = vadd.f32 %v445, %v456
      %v459 = vadd.f32 %v446, %v457
      %460 = vrot.lane.b32.xlu0 %v335, 113
      %v461 = vpop.permute.xlu0 %460
      %462 = vrot.lane.b32.xlu0 %v379, 113
      %v463 = vpop.permute.xlu0 %462
      %vm464 = vcmp.lt.s32.totalorder %v396, 113
      %v465 = vsel %vm464, %v461, %v463
      %v466 = vsel %vm464, %v463, %v461
      %v467 = vperm.slane %v387, 6
      %v468 = vperm.slane %v388, 6
      %v469 = vmul.f32 %v465, %v467
      %v470 = vmul.f32 %v466, %v468
      %v471 = vadd.f32 %v458, %v469
      %v472 = vadd.f32 %v459, %v470
      %473 = vrot.lane.b32.xlu0 %v338, 112
      %v474 = vpop.permute.xlu0 %473
      %475 = vrot.lane.b32.xlu0 %v382, 112
      %v476 = vpop.permute.xlu0 %475
      %vm477 = vcmp.lt.s32.totalorder %v396, 112
      %v478 = vsel %vm477, %v474, %v476
      %v479 = vsel %vm477, %v476, %v474
      %v480 = vperm.slane %v387, 7
      %v481 = vperm.slane %v388, 7
      %v482 = vmul.f32 %v478, %v480
      %v483 = vmul.f32 %v479, %v481
      %v484 = vadd.f32 %v471, %v482
      %v485 = vadd.f32 %v472, %v483
      %486 = vrot.lane.b32.xlu0 %v341, 111
      %v487 = vpop.permute.xlu0 %486
      %488 = vrot.lane.b32.xlu0 %v385, 111
      %v489 = vpop.permute.xlu0 %488
      %vm490 = vcmp.lt.s32.totalorder %v396, 111
      %v491 = vsel %vm490, %v487, %v489
      %v492 = vsel %vm490, %v489, %v487
      %v493 = vperm.slane %v389, 0
      %v494 = vperm.slane %v390, 0
      %v495 = vmul.f32 %v491, %v493
      %v496 = vmul.f32 %v492, %v494
      %v497 = vadd.f32 %v484, %v495
      %v498 = vadd.f32 %v485, %v496
      %v499 = vld [vmem:[%s2] sm:$0xff]
      %501 = vset.pattern.permute.xlu0 0
      %502 = vperm.xlu0 %501, %v499
      %v503 = vpop.permute.xlu0 %502
      %v505 = vadd.f32 %v497, %v503
      %v506 = vadd.f32 %v498, %v503
      %v507 = vmax.f32 %v505, 0.0
      %v508 = vmax.f32 %v506, 0.0
      %v509 = vld [vmem:[%s3] sm:$0x7]
      %v510 = vld [vmem:[%s4] sm:$0x7]
      %512 = vset.pattern.permute.xlu0 0
      %513 = vperm.xlu0 %512, %v510
      %v514 = vpop.permute.xlu0 %513
      %vm516 = vcmask 64512
      %v518 = vsel %vm516, %v509, 0
      %520 = vmatpush.msra.mxu0 0.0
      %521 = vmatpush.msra.mxu0 0.0
      %522 = vmatpush.msra.mxu0 0.0
      %523 = vmatpush.msra.mxu0 0.0
      %524 = vmatpush.msra.mxu0 0.0
      %525 = vmatpush.msra.mxu0 0.0
      %526 = vmatpush.msra.mxu0 0.0
      %527 = vmatpush.msra.mxu0 0.0
      %528 = vmatpush.msra.mxu0 0.0
      %529 = vmatpush.msra.mxu0 0.0
      %530 = vmatpush.msra.mxu0 0.0
      %531 = vmatpush.msra.mxu0 0.0
      %532 = vmatpush.msra.mxu0 0.0
      %533 = vmatpush.msra.mxu0 0.0
      %534 = vmatpush.msra.mxu0 0.0
      %535 = vmatpush.msra.mxu0 %v507
      %536 = vmatmul.f32.gmra.mxu0 %v518
      %v537 = vpop.f32.mrf.mxu0
      %v538 = vadd.f32 %v514, %v537
      %539 = vdwg.mxu0
      %540 = vmatpush.msra.mxu0 0.0
      %541 = vmatpush.msra.mxu0 0.0
      %542 = vmatpush.msra.mxu0 0.0
      %543 = vmatpush.msra.mxu0 0.0
      %544 = vmatpush.msra.mxu0 0.0
      %545 = vmatpush.msra.mxu0 0.0
      %546 = vmatpush.msra.mxu0 0.0
      %547 = vmatpush.msra.mxu0 0.0
      %548 = vmatpush.msra.mxu0 0.0
      %549 = vmatpush.msra.mxu0 0.0
      %550 = vmatpush.msra.mxu0 0.0
      %551 = vmatpush.msra.mxu0 0.0
      %552 = vmatpush.msra.mxu0 0.0
      %553 = vmatpush.msra.mxu0 0.0
      %554 = vmatpush.msra.mxu0 0.0
      %555 = vmatpush.msra.mxu0 %v508
      %556 = vmatmul.f32.gmra.mxu0 %v518
      %v557 = vpop.f32.mrf.mxu0
      %v558 = vadd.f32 %v514, %v557
      %559 = vdwg.mxu0
      %v562 = vrot.slane %v558, 4
      %v563 = vsel %vm294, %v538, %v562
      %565 = vst [vmem:[%s251] sm:$0x77] %v563
      %p566 = scmp.lt.s32.totalorder %s17, 1
      %s567 = scalar_select %p566, %s17, 1
      %s568 = smul.addr %s567, 2
      %s569 = smul.addr %s568, 4
      %s570 = scalar_lea.vmem %s6, %s569
      // Predicated region
      $region45: #{tpu_custom_call.1} parent=43 // pred_check
        %p571 = pneg %p166
      $region46: #{tpu_custom_call.1} parent=43 // pred_check_branch
        %573 = sbr.rel (%p571) target = $region48
      $region47: #{tpu_custom_call.1} parent=43 // pred_region
        _
      $region48: #{tpu_custom_call.1} parent=43 // pred_fallthru
        _
    $region44: #{tpu_custom_call.1} parent=5 // pred_fallthru
      _
    %p574 = scmp.le.s32.totalorder 2, %s12
    // Predicated region
    $region49: #{tpu_custom_call.1} parent=5 // pred_check
      %p575 = pneg %p574
    $region50: #{tpu_custom_call.1} parent=5 // pred_check_branch
      %577 = sbr.rel (%p575) target = $region52
    $region51: #{tpu_custom_call.1} parent=5 // pred_region
      %s578 = ssub.s32 %s12, 2
      // Predicated region
      $region53: #{tpu_custom_call.1} parent=51 // pred_check
        %p579 = pneg %p172
      $region54: #{tpu_custom_call.1} parent=51 // pred_check_branch
        %581 = sbr.rel (%p579) target = $region56
      $region55: #{tpu_custom_call.1} parent=51 // pred_region
        %p582 = scmp.lt.s32.totalorder %s18, 1
        %s583 = scalar_select %p582, %s18, 1
        %s584 = smul.addr %s583, 2
        %s585 = smul.addr %s584, 4
        %s586 = scalar_lea.vmem %s6, %s585
      $region56: #{tpu_custom_call.1} parent=51 // pred_fallthru
        _
    $region52: #{tpu_custom_call.1} parent=5 // pred_fallthru
      _
  $region6: #{tpu_custom_call.1} parent=0 // loop_footer
    %s16 = sadd.s32 1, %s12
  $region7: #{tpu_custom_call.1} parent=0 // loop_footer_branch
    %11 = sbr.rel target = $region3
  $region8: #{tpu_custom_call.1} parent=0 // loop_exit
    _

</llo_original>
